<compile_context>
chip_gen: v6e
topology: v6e:2x2x1
jax: 0.10.0
libtpu: 0.0.40
codegen_flags: <defaults>
</compile_context>

<pallas_src>
import functools

import jax
import jax.numpy as jnp
from jax.experimental import pallas as pl
from jax.experimental.pallas import tpu as pltpu

LN_EPS = 1e-5


def _round_up(x, m):
    return ((x + m - 1) // m) * m


def _vmem_capacity_bytes():
    """Per-TensorCore VMEM capacity; conservative fallback if query fails."""
    try:
        return int(pltpu.get_tpu_info().vmem_capacity_bytes)
    except Exception:
        return 64 << 20  # v7x per-TC size — safe lower bound everywhere


def _make_block_spec(shape, index_map, single_buffer=False):
    """BlockSpec helper: request a single VMEM buffer for grid-invariant operands."""
    if single_buffer:
        try:
            return pl.BlockSpec(shape, index_map, pipeline_mode=pl.Buffered(1))
        except TypeError:  # older jax without pipeline_mode — fall back to default
            pass
    return pl.BlockSpec(shape, index_map)


def prepare_params(weight, bias, gamma=None, beta=None, *, mxu_dtype=jnp.bfloat16):
    """One-time parameter preparation (NOT per forward call).

    weight: (D_out, D_in) PyTorch convention; bias: (D_out,);
    gamma/beta: (D_in,) LayerNorm affine (or None for nn.LayerNorm defaults).

    Pre-transposes the weight to (D_in, D_out), casts to the MXU dtype
    (bf16 default: native on v5e/v6e/v7x, halves weight DMA/VMEM), and
    zero-pads D_out to a multiple of 128 for lane-dense output stores.
    D_in is intentionally left unpadded (full-dim blocks are legal).
    """
    d_out, d_in = weight.shape
    d_out_p = _round_up(d_out, 128)

    w_t = jnp.zeros((d_in, d_out_p), mxu_dtype)
    w_t = w_t.at[:, :d_out].set(jnp.transpose(weight).astype(mxu_dtype))
    b2d = jnp.zeros((1, d_out_p), jnp.float32).at[:, :d_out].set(
        bias.astype(jnp.float32))

    if gamma is None:
        gamma = jnp.ones((d_in,), jnp.float32)
    if beta is None:
        beta = jnp.zeros((d_in,), jnp.float32)
    g2d = gamma.astype(jnp.float32).reshape(1, d_in)
    be2d = beta.astype(jnp.float32).reshape(1, d_in)

    return (w_t, b2d, g2d, be2d, d_out)


def _make_kernel(layer_norm, relu, mxu_dtype):
    if layer_norm:
        def kernel(x_ref, g_ref, bln_ref, w_ref, b_ref, o_ref):
            # LN math stays f32 (two-pass centered variance = PyTorch numerics).
            x = x_ref[...].astype(jnp.float32)
            mean = jnp.mean(x, axis=-1, keepdims=True)
            xc = x - mean
            var = jnp.mean(xc * xc, axis=-1, keepdims=True)
            xn = xc * jax.lax.rsqrt(var + LN_EPS)
            xn = xn * g_ref[...] + bln_ref[...]
            y = jnp.dot(xn.astype(mxu_dtype), w_ref[...],
                        preferred_element_type=jnp.float32) + b_ref[...]
            if relu:
                y = jnp.maximum(y, 0.0)
            o_ref[...] = y.astype(o_ref.dtype)
    else:
        def kernel(x_ref, w_ref, b_ref, o_ref):
            y = jnp.dot(x_ref[...].astype(mxu_dtype), w_ref[...],
                        preferred_element_type=jnp.float32) + b_ref[...]
            if relu:
                y = jnp.maximum(y, 0.0)
            o_ref[...] = y.astype(o_ref.dtype)
    return kernel


def _choose_tiles(m, d_in, d_out_p, x_isize, w_isize, out_isize, vmem_cap):
    """Pick (tm, tn) from the actual VMEM capacity of this chip generation."""
    usable = int(vmem_cap * 0.72)          # headroom for compiler-internal scratch

    # --- D_out tiling: keep the whole weight resident when it fits comfortably.
    if d_in * d_out_p * w_isize <= int(usable * 0.45):
        tn, w_bufs = d_out_p, 1            # constant block index -> single buffer
    else:
        w_bufs = 2                          # block index varies along j
        tn = (int(usable * 0.45) // (w_bufs * d_in * w_isize)) // 128 * 128
        tn = max(128, min(tn, d_out_p))
        while d_out_p % tn:
            tn -= 128
    n_tiles = d_out_p // tn
    w_bytes = w_bufs * d_in * tn * w_isize

    # Small operands: bias tile (<=2 bufs) + LN gamma/beta (single-buffered).
    small_bytes = 2 * tn * 4 + 2 * d_in * 4 * 2

    # --- Row tiling: spend the rest on double-buffered x / out tiles.
    per_row = 2 * d_in * x_isize + 2 * tn * out_isize
    tm = max(8, (usable - w_bytes - small_bytes) // per_row)
    tm = min(tm, 1024, _round_up(m, 8))
    tm = max(8, (tm // 8) * 8)
    if tm >= 256:
        tm = (tm // 128) * 128

    # Megacore (v7x): guarantee >= 2 grid steps so both TensorCores get work.
    if (pl.cdiv(m, tm) * n_tiles) < 2 and m > 8:
        tm = max(8, _round_up(pl.cdiv(m, 2), 8))

    need = w_bytes + small_bytes + tm * per_row
    return tm, tn, n_tiles, w_bufs, need


@functools.partial(jax.jit, static_argnames=("d_out", "layer_norm", "relu", "out_dtype"))
def _forward(x, w_t, b2d, g2d, be2d, *, d_out, layer_norm, relu, out_dtype):
    n, l, d_in = x.shape
    assert w_t.shape[0] == d_in, "input feature dim mismatch"
    d_out_p = w_t.shape[1]
    m = n * l
    x2d = x.reshape(m, d_in)                 # free reshape, no host-side padding

    vmem_cap = _vmem_capacity_bytes()
    tm, tn, n_tiles, w_bufs, need = _choose_tiles(
        m, d_in, d_out_p, x2d.dtype.itemsize, w_t.dtype.itemsize,
        jnp.dtype(out_dtype).itemsize, vmem_cap)
    m_tiles = pl.cdiv(m, tm)

    kernel = _make_kernel(layer_norm, relu, w_t.dtype)

    x_spec = pl.BlockSpec((tm, d_in), lambda i, j: (i, 0))
    w_spec = _make_block_spec((d_in, tn), lambda i, j: (0, j),
                              single_buffer=(w_bufs == 1))
    b_spec = _make_block_spec((1, tn), lambda i, j: (0, j),
                              single_buffer=(n_tiles == 1))
    vec_spec = _make_block_spec((1, d_in), lambda i, j: (0, 0), single_buffer=True)
    out_spec = pl.BlockSpec((tm, tn), lambda i, j: (i, j))

    if layer_norm:
        in_specs = [x_spec, vec_spec, vec_spec, w_spec, b_spec]
        args = (x2d, g2d, be2d, w_t, b2d)
    else:
        in_specs = [x_spec, w_spec, b_spec]
        args = (x2d, w_t, b2d)

    vmem_limit = int(min(vmem_cap * 0.92,
                         max(need * 1.3 + (4 << 20), 32 << 20)))

    out2d = pl.pallas_call(
        kernel,
        out_shape=jax.ShapeDtypeStruct((m, d_out_p), out_dtype),
        grid_spec=pltpu.PrefetchScalarGridSpec(
            num_scalar_prefetch=0,
            grid=(m_tiles, n_tiles),
            in_specs=in_specs,
            out_specs=out_spec,
        ),
        compiler_params=pltpu.CompilerParams(
            dimension_semantics=("parallel", "parallel"),
            vmem_limit_bytes=vmem_limit,
        ),
    )(*args)

    if d_out != d_out_p:
        out2d = out2d[:, :d_out]
    return out2d.reshape(n, l, d_out)


def linear_layer_forward(x, params, *, layer_norm=True, relu=True, out_dtype=None):
    """x: (N, L, D_in); params: output of prepare_params().

    out_dtype defaults to x.dtype (pass jnp.float32 for exact parity with the
    PyTorch module's `.float()` output)."""
    w_t, b2d, g2d, be2d, d_out = params
    out_dtype = jnp.dtype(x.dtype if out_dtype is None else out_dtype)
    return _forward(x, w_t, b2d, g2d, be2d, d_out=d_out,
                    layer_norm=layer_norm, relu=relu, out_dtype=out_dtype)


if __name__ == "__main__":
    # Small shapes consistent with the module's (N, L, D) forward.
    N, L, D_in, D_out = 2, 8, 32, 32

    key = jax.random.PRNGKey(0)
    kx, kw, kb = jax.random.split(key, 3)

    x = jax.random.normal(kx, (N, L, D_in), dtype=jnp.float32)

    # PyTorch-Linear-like deterministic init.
    bound = float(D_in) ** -0.5
    weight = jax.random.uniform(kw, (D_out, D_in), jnp.float32, -bound, bound)
    bias = jax.random.uniform(kb, (D_out,), jnp.float32, -bound, bound)
    gamma = jnp.ones((D_in,), jnp.float32)   # nn.LayerNorm default weight
    beta = jnp.zeros((D_in,), jnp.float32)   # nn.LayerNorm default bias

    # Plain-JAX f32 reference (module semantics in eval mode).
    mean = jnp.mean(x, axis=-1, keepdims=True)
    var = jnp.mean((x - mean) ** 2, axis=-1, keepdims=True)
    xn = (x - mean) / jnp.sqrt(var + LN_EPS) * gamma + beta
    ref_ln_relu = jnp.maximum(
        jnp.einsum("nld,od->nlo", xn, weight,
                   precision=jax.lax.Precision.HIGHEST) + bias, 0.0)
    ref_plain = jnp.einsum("nld,od->nlo", x, weight,
                           precision=jax.lax.Precision.HIGHEST) + bias

    # 1) Default (bf16 MXU weights) configuration — fast path on v6e/v7x.
    params_bf16 = prepare_params(weight, bias, gamma, beta)
    out1 = linear_layer_forward(x, params_bf16, layer_norm=True, relu=True)
    jax.block_until_ready(out1)
    assert out1.shape == (N, L, D_out) and out1.dtype == x.dtype
    assert jnp.allclose(out1, ref_ln_relu, atol=5e-2, rtol=5e-2)

    # 2) f32-weight configuration (closest numeric parity with PyTorch).
    params_f32 = prepare_params(weight, bias, gamma, beta, mxu_dtype=jnp.float32)
    out2 = linear_layer_forward(x, params_f32, layer_norm=True, relu=True)
    jax.block_until_ready(out2)
    assert jnp.allclose(out2, ref_ln_relu, atol=2e-3, rtol=2e-3)

    # 3) layer_norm=False / relu=False branch.
    out3 = linear_layer_forward(x, params_f32, layer_norm=False, relu=False)
    jax.block_until_ready(out3)
    assert jnp.allclose(out3, ref_plain, atol=2e-3, rtol=2e-3)

    print("KERNEL_OK")
</pallas_src>

<mosaic_0001>
module attributes {stable_mosaic.version = 11 : i64} {
  func.func @kernel(%arg0: i32, %arg1: i32, %arg2: memref<8x32xf32, #tpu.memory_space<vmem>>, %arg3: memref<1x32xf32, #tpu.memory_space<vmem>>, %arg4: memref<1x32xf32, #tpu.memory_space<vmem>>, %arg5: memref<32x128xbf16, #tpu.memory_space<vmem>>, %arg6: memref<1x128xf32, #tpu.memory_space<vmem>>, %arg7: memref<8x128xf32, #tpu.memory_space<vmem>>) attributes {dimension_semantics = [#tpu.dimension_semantics<parallel>, #tpu.dimension_semantics<parallel>], iteration_bounds = array<i64: 2, 1>, scalar_prefetch = 0 : i64, scratch_operands = 0 : i64, tpu.core_type = #tpu.core_type<tc>, window_params = [{transform_indices = @transform_0, window_bounds = array<i64: 8, 32>}, {pipeline_mode = #tpu.pipeline_mode<synchronous>, transform_indices = @transform_1, window_bounds = array<i64: 1, 32>}, {pipeline_mode = #tpu.pipeline_mode<synchronous>, transform_indices = @transform_2, window_bounds = array<i64: 1, 32>}, {pipeline_mode = #tpu.pipeline_mode<synchronous>, transform_indices = @transform_3, window_bounds = array<i64: 32, 128>}, {pipeline_mode = #tpu.pipeline_mode<synchronous>, transform_indices = @transform_4, window_bounds = array<i64: 1, 128>}, {transform_indices = @transform_5, window_bounds = array<i64: 8, 128>}]} {
    %c0 = arith.constant 0 : index
    %c0_0 = arith.constant 0 : index
    %0 = vector.load %arg2[%c0, %c0_0] : memref<8x32xf32, #tpu.memory_space<vmem>>, vector<8x32xf32>
    %cst = arith.constant dense<0.000000e+00> : vector<8xf32>
    %1 = vector.multi_reduction <add>, %0, %cst [1] : vector<8x32xf32> to vector<8xf32>
    %2 = vector.shape_cast %1 : vector<8xf32> to vector<8x1xf32>
    %cst_1 = arith.constant 3.200000e+01 : f32
    %3 = vector.broadcast %cst_1 : f32 to vector<8x1xf32>
    %4 = arith.divf %2, %3 : vector<8x1xf32>
    %5 = vector.broadcast %4 : vector<8x1xf32> to vector<8x32xf32>
    %6 = arith.subf %0, %5 : vector<8x32xf32>
    %7 = arith.mulf %6, %6 : vector<8x32xf32>
    %cst_2 = arith.constant dense<0.000000e+00> : vector<8xf32>
    %8 = vector.multi_reduction <add>, %7, %cst_2 [1] : vector<8x32xf32> to vector<8xf32>
    %9 = vector.shape_cast %8 : vector<8xf32> to vector<8x1xf32>
    %cst_3 = arith.constant 3.200000e+01 : f32
    %10 = vector.broadcast %cst_3 : f32 to vector<8x1xf32>
    %11 = arith.divf %9, %10 : vector<8x1xf32>
    %cst_4 = arith.constant 9.99999974E-6 : f32
    %12 = vector.broadcast %cst_4 : f32 to vector<8x1xf32>
    %13 = arith.addf %11, %12 : vector<8x1xf32>
    %14 = math.rsqrt %13 : vector<8x1xf32>
    %15 = vector.broadcast %14 : vector<8x1xf32> to vector<8x32xf32>
    %16 = arith.mulf %6, %15 : vector<8x32xf32>
    %c0_5 = arith.constant 0 : index
    %c0_6 = arith.constant 0 : index
    %17 = vector.load %arg3[%c0_5, %c0_6] : memref<1x32xf32, #tpu.memory_space<vmem>>, vector<1x32xf32>
    %18 = vector.broadcast %17 : vector<1x32xf32> to vector<8x32xf32>
    %19 = arith.mulf %16, %18 : vector<8x32xf32>
    %c0_7 = arith.constant 0 : index
    %c0_8 = arith.constant 0 : index
    %20 = vector.load %arg4[%c0_7, %c0_8] : memref<1x32xf32, #tpu.memory_space<vmem>>, vector<1x32xf32>
    %21 = vector.broadcast %20 : vector<1x32xf32> to vector<8x32xf32>
    %22 = arith.addf %19, %21 : vector<8x32xf32>
    %23 = arith.truncf %22 : vector<8x32xf32> to vector<8x32xbf16>
    %c0_9 = arith.constant 0 : index
    %c0_10 = arith.constant 0 : index
    %24 = vector.load %arg5[%c0_9, %c0_10] : memref<32x128xbf16, #tpu.memory_space<vmem>>, vector<32x128xbf16>
    %cst_11 = arith.constant dense<0.000000e+00> : vector<8x128xf32>
    %25 = tpu.matmul %23, %24, %cst_11 {dimension_numbers = #tpu.dot_dimension_numbers<[1], [0], [0], [1], [0, 0, 1, 1], [], []>} : vector<8x32xbf16>, vector<32x128xbf16>, vector<8x128xf32> -> vector<8x128xf32>
    %c0_12 = arith.constant 0 : index
    %c0_13 = arith.constant 0 : index
    %26 = vector.load %arg6[%c0_12, %c0_13] : memref<1x128xf32, #tpu.memory_space<vmem>>, vector<1x128xf32>
    %27 = vector.broadcast %26 : vector<1x128xf32> to vector<8x128xf32>
    %28 = arith.addf %25, %27 : vector<8x128xf32>
    %cst_14 = arith.constant 0.000000e+00 : f32
    %29 = vector.broadcast %cst_14 : f32 to vector<8x128xf32>
    %30 = arith.maximumf %28, %29 : vector<8x128xf32>
    %c0_15 = arith.constant 0 : index
    %c0_16 = arith.constant 0 : index
    %31 = vector.load %arg7[%c0_15, %c0_16] : memref<8x128xf32, #tpu.memory_space<vmem>>, vector<8x128xf32>
    tpu.vector_store %arg7[%c0_15, %c0_16], %30 {strides = array<i32>} : memref<8x128xf32, #tpu.memory_space<vmem>>, vector<8x128xf32>,
    return
  }
  func.func @transform_0(%arg0: i32, %arg1: i32) -> (i32, i32) {
    %c0_i32 = arith.constant 0 : i32
    %c0_i32_0 = arith.constant 0 : i32
    return %arg0, %c0_i32 : i32, i32
  }
  func.func @transform_1(%arg0: i32, %arg1: i32) -> (i32, i32) {
    %c0_i32 = arith.constant 0 : i32
    %c0_i32_0 = arith.constant 0 : i32
    %c0_i32_1 = arith.constant 0 : i32
    return %c0_i32, %c0_i32_0 : i32, i32
  }
  func.func @transform_2(%arg0: i32, %arg1: i32) -> (i32, i32) {
    %c0_i32 = arith.constant 0 : i32
    %c0_i32_0 = arith.constant 0 : i32
    %c0_i32_1 = arith.constant 0 : i32
    return %c0_i32, %c0_i32_0 : i32, i32
  }
  func.func @transform_3(%arg0: i32, %arg1: i32) -> (i32, i32) {
    %c0_i32 = arith.constant 0 : i32
    %c0_i32_0 = arith.constant 0 : i32
    return %c0_i32, %arg1 : i32, i32
  }
  func.func @transform_4(%arg0: i32, %arg1: i32) -> (i32, i32) {
    %c0_i32 = arith.constant 0 : i32
    %c0_i32_0 = arith.constant 0 : i32
    return %c0_i32, %arg1 : i32, i32
  }
  func.func @transform_5(%arg0: i32, %arg1: i32) -> (i32, i32) {
    %c0_i32 = arith.constant 0 : i32
    return %arg0, %arg1 : i32, i32
  }
}

</mosaic_0001>

<llo_original>
// kernel: _forward.1
$region0: #{_forward.1}
  #allocation0 [shape = 'u32[]', space=smem, size = 0x4, offset = 0x4, fixed_abs, tag = 'smem constant byte address 0x4 - core index']
  #allocation1 [shape = 'u32[144,128]{1,0:T(1,128)}', space=vmem, size = 0x12000, scoped, tag = 'internal scratch']
  %s0 = inlined_call_operand.hbm [shape: f32[16,32], index: 0, kind: input, shape index: {}]
  %s1 = inlined_call_operand.vmem [shape: f32[1,32], index: 1, kind: input, shape index: {}]
  %s2 = inlined_call_operand.vmem [shape: f32[1,32], index: 2, kind: input, shape index: {}]
  %s3 = inlined_call_operand.hbm [shape: bf16[32,128], index: 3, kind: input, shape index: {}]
  %s4 = inlined_call_operand.vmem [shape: f32[1,128], index: 4, kind: input, shape index: {}]
  %s5 = inlined_call_operand.vmem [shape: f32[16,128], index: 5, kind: output, shape index: {}]
  %s6 = sld [smem:[#allocation0]]
  $region61: #{_forward.1} parent=0
    _
  %s8 = ssub.s32 1, %s6
  %s9 = scalar_select 0, %s8, %s6
  $region1: #{_forward.1} parent=0
    #allocation2 [shape = 'u8[8192]{0}', space=vmem, size = 0x2000, scoped, tag = 'input window, operand 0']
    #allocation3 [shape = 's32[2]{0}', space=sflag, size = 0x8, scoped, tag = 'scoped memory for _forward.1']
    #allocation4 [shape = 'u8[8192]{0}', space=vmem, size = 0x2000, scoped, tag = 'input window, operand 3, single buffered']
    #allocation5 [shape = 's32[1]{0}', space=sflag, size = 0x4, scoped, tag = 'scoped memory for _forward.1']
    %10 = vsyncpa [#allocation3], 0
    %s11 = scalar_lea.sflag [#allocation3], 1
    %12 = vsyncpa %s11, 0
    %13 = vsyncpa [#allocation5], 0
    loop: start=0, step=1, limit=4
    $region2: #{_forward.1} parent=1 // loop_pre_header
      _
    $region3: #{_forward.1} parent=1 // loop_header
      %s15 = sphi 0, %s19
      %p16 = scmp.ge.s32.totalorder %s15, 4
      %s22 = sphi 0, %s34
      %s23 = sphi 0, %s30
      %s24 = sphi 0, %s22
      %s25 = sphi 0, %s23
      %s26 = sphi 0, %s24
      %s27 = sphi 0, %s25
      %s37 = sphi 0, %s39
      %s40 = sphi 0, %s37
      %s41 = sphi 0, %s40
      %s57 = sphi 0, %s41
      %s61 = sphi 0, %s61
      %s63 = sphi 0, %s61
      %s64 = sphi 0, %s63
      %s78 = sphi 0, %s64
      %s82 = sphi 0, %s82
      %s84 = sphi 0, %s82
      %s85 = sphi 0, %s84
      %s99 = sphi 0, %s85
      %s105 = sphi 0, %s107
      %s108 = sphi 0, %s105
      %s109 = sphi 0, %s108
      %s125 = sphi 0, %s109
      %s131 = sphi 0, %s133
      %s134 = sphi 0, %s131
      %s135 = sphi 0, %s134
      %s151 = sphi 0, %s135
      %s159 = sphi 0, %s161
      %s162 = sphi 0, %s159
      %s163 = sphi 0, %s162
      %s179 = sphi 0, %s163
    $region4: #{_forward.1} parent=1 // loop_header_branch
      %18 = sbr.rel (%p16) target = $region8
    $region5: #{_forward.1} parent=1 // loop_body
      %s20 = ssub.s32 %s15, 1
      %s21 = ssub.s32 %s15, 2
      %s28 = sadd.s32 1, %s23
      %p29 = scmp.ge.s32.totalorder %s28, 1
      %s30 = scalar_select %p29, 0, %s28
      %s31 = sadd.s32 1, %s22
      %s32 = scalar_select %p29, %s31, %s22
      %p33 = scmp.ge.s32.totalorder %s32, 2
      %s34 = scalar_select %p33, 0, %s32
      %s35 = ssub.s32 %s22, %s34
      %p36 = scmp.eq.s32.totalorder %s35, 0
      %s38 = sadd.s32 %s37, 1
      %s39 = scalar_select %p36, %s37, %s38
      %p42 = pneg %p36
      %p43 = scmp.eq.s32.totalorder %s15, 1
      %p44 = por %p42, %p43
      %p45 = scmp.ne.s32.totalorder %s37, %s40
      %p46 = scmp.eq.s32.totalorder %s15, 0
      %p47 = por %p45, %p46
      %p48 = scmp.ne.s32.totalorder %s37, %s40
      %p49 = scmp.eq.s32.totalorder %s20, 1
      %p50 = por %p48, %p49
      %p51 = scmp.ne.s32.totalorder %s40, %s41
      %p52 = scmp.eq.s32.totalorder %s20, 0
      %p53 = por %p51, %p52
      %p54 = scmp.ne.s32.totalorder %s40, %s41
      %p55 = scmp.eq.s32.totalorder %s21, 1
      %p56 = por %p54, %p55
      %p58 = scmp.ne.s32.totalorder %s41, %s57
      %p59 = scmp.eq.s32.totalorder %s21, 0
      %p60 = por %p58, %p59
      %s62 = sadd.s32 %s61, 1
      %p65 = scmp.eq.s32.totalorder %s15, 1
      %p66 = scmp.ne.s32.totalorder %s61, %s63
      %p67 = scmp.eq.s32.totalorder %s15, 0
      %p68 = por %p66, %p67
      %p69 = scmp.ne.s32.totalorder %s61, %s63
      %p70 = scmp.eq.s32.totalorder %s20, 1
      %p71 = por %p69, %p70
      %p72 = scmp.ne.s32.totalorder %s63, %s64
      %p73 = scmp.eq.s32.totalorder %s20, 0
      %p74 = por %p72, %p73
      %p75 = scmp.ne.s32.totalorder %s63, %s64
      %p76 = scmp.eq.s32.totalorder %s21, 1
      %p77 = por %p75, %p76
      %p79 = scmp.ne.s32.totalorder %s64, %s78
      %p80 = scmp.eq.s32.totalorder %s21, 0
      %p81 = por %p79, %p80
      %s83 = sadd.s32 %s82, 1
      %p86 = scmp.eq.s32.totalorder %s15, 1
      %p87 = scmp.ne.s32.totalorder %s82, %s84
      %p88 = scmp.eq.s32.totalorder %s15, 0
      %p89 = por %p87, %p88
      %p90 = scmp.ne.s32.totalorder %s82, %s84
      %p91 = scmp.eq.s32.totalorder %s20, 1
      %p92 = por %p90, %p91
      %p93 = scmp.ne.s32.totalorder %s84, %s85
      %p94 = scmp.eq.s32.totalorder %s20, 0
      %p95 = por %p93, %p94
      %p96 = scmp.ne.s32.totalorder %s84, %s85
      %p97 = scmp.eq.s32.totalorder %s21, 1
      %p98 = por %p96, %p97
      %p100 = scmp.ne.s32.totalorder %s85, %s99
      %p101 = scmp.eq.s32.totalorder %s21, 0
      %p102 = por %p100, %p101
      %s103 = ssub.s32 %s23, %s30
      %p104 = scmp.eq.s32.totalorder %s103, 0
      %s106 = sadd.s32 %s105, 1
      %s107 = scalar_select %p104, %s105, %s106
      %p110 = pneg %p104
      %p111 = scmp.eq.s32.totalorder %s15, 1
      %p112 = por %p110, %p111
      %p113 = scmp.ne.s32.totalorder %s105, %s108
      %p114 = scmp.eq.s32.totalorder %s15, 0
      %p115 = por %p113, %p114
      %p116 = scmp.ne.s32.totalorder %s105, %s108
      %p117 = scmp.eq.s32.totalorder %s20, 1
      %p118 = por %p116, %p117
      %p119 = scmp.ne.s32.totalorder %s108, %s109
      %p120 = scmp.eq.s32.totalorder %s20, 0
      %p121 = por %p119, %p120
      %p122 = scmp.ne.s32.totalorder %s108, %s109
      %p123 = scmp.eq.s32.totalorder %s21, 1
      %p124 = por %p122, %p123
      %p126 = scmp.ne.s32.totalorder %s109, %s125
      %p127 = scmp.eq.s32.totalorder %s21, 0
      %p128 = por %p126, %p127
      %s129 = ssub.s32 %s23, %s30
      %p130 = scmp.eq.s32.totalorder %s129, 0
      %s132 = sadd.s32 %s131, 1
      %s133 = scalar_select %p130, %s131, %s132
      %p136 = pneg %p130
      %p137 = scmp.eq.s32.totalorder %s15, 1
      %p138 = por %p136, %p137
      %p139 = scmp.ne.s32.totalorder %s131, %s134
      %p140 = scmp.eq.s32.totalorder %s15, 0
      %p141 = por %p139, %p140
      %p142 = scmp.ne.s32.totalorder %s131, %s134
      %p143 = scmp.eq.s32.totalorder %s20, 1
      %p144 = por %p142, %p143
      %p145 = scmp.ne.s32.totalorder %s134, %s135
      %p146 = scmp.eq.s32.totalorder %s20, 0
      %p147 = por %p145, %p146
      %p148 = scmp.ne.s32.totalorder %s134, %s135
      %p149 = scmp.eq.s32.totalorder %s21, 1
      %p150 = por %p148, %p149
      %p152 = scmp.ne.s32.totalorder %s135, %s151
      %p153 = scmp.eq.s32.totalorder %s21, 0
      %p154 = por %p152, %p153
      %s155 = ssub.s32 %s22, %s34
      %s156 = ssub.s32 %s23, %s30
      %s157 = sor.u32 %s155, %s156
      %p158 = scmp.eq.s32.totalorder %s157, 0
      %s160 = sadd.s32 %s159, 1
      %s161 = scalar_select %p158, %s159, %s160
      %p164 = pneg %p158
      %p165 = scmp.eq.s32.totalorder %s15, 1
      %p166 = por %p164, %p165
      %p167 = scmp.ne.s32.totalorder %s159, %s162
      %p168 = scmp.eq.s32.totalorder %s15, 0
      %p169 = por %p167, %p168
      %p170 = scmp.ne.s32.totalorder %s159, %s162
      %p171 = scmp.eq.s32.totalorder %s20, 1
      %p172 = por %p170, %p171
      %p173 = scmp.ne.s32.totalorder %s162, %s163
      %p174 = scmp.eq.s32.totalorder %s20, 0
      %p175 = por %p173, %p174
      %p176 = scmp.ne.s32.totalorder %s162, %s163
      %p177 = scmp.eq.s32.totalorder %s21, 1
      %p178 = por %p176, %p177
      %p180 = scmp.ne.s32.totalorder %s163, %s179
      %p181 = scmp.eq.s32.totalorder %s21, 0
      %p182 = por %p180, %p181
      %p183 = scmp.le.s32.totalorder 1, %s15
      %p184 = scmp.lt.s32.totalorder %s15, 3
      %p185 = pnand %p183, %p184
      %p186 = pneg %p185
      // Predicated region
      $region9: #{_forward.1} parent=5 // pred_check
        _
      $region10: #{_forward.1} parent=5 // pred_check_branch
        %188 = sbr.rel (%p185) target = $region12
      $region11: #{_forward.1} parent=5 // pred_region
        %s189 = ssub.s32 %s15, 1
        // Predicated region
        $region13: #{_forward.1} parent=11 // pred_check
          %p190 = pneg %p74
        $region14: #{_forward.1} parent=11 // pred_check_branch
          %192 = sbr.rel (%p190) target = $region16
        $region15: #{_forward.1} parent=11 // pred_region
          _
        $region16: #{_forward.1} parent=11 // pred_fallthru
          _
        // Predicated region
        $region17: #{_forward.1} parent=11 // pred_check
          %p193 = pneg %p95
        $region18: #{_forward.1} parent=11 // pred_check_branch
          %195 = sbr.rel (%p193) target = $region20
        $region19: #{_forward.1} parent=11 // pred_region
          _
        $region20: #{_forward.1} parent=11 // pred_fallthru
          _
        // Predicated region
        $region21: #{_forward.1} parent=11 // pred_check
          %p196 = pneg %p121
        $region22: #{_forward.1} parent=11 // pred_check_branch
          %198 = sbr.rel (%p196) target = $region24
        $region23: #{_forward.1} parent=11 // pred_region
          %s200 = ssub.s32 256, 256
          %201 = vsyncadd [#allocation5], %s200
          %s202 = smul.addr %s25, 64
          %s203 = scalar_lea.hbm %s3, %s202
          %s204 = sshll.u32 [#allocation4], 4
          %s205 = int_to_ptr.vmem [resolvable:$true] %s204
          %210 = dma.hbm_to_vmem [thread:$0]  %s203, 256, %s205, [#allocation5], 64, 64, 4
        $region24: #{_forward.1} parent=11 // pred_fallthru
          _
        // Predicated region
        $region25: #{_forward.1} parent=11 // pred_check
          %p211 = pneg %p147
        $region26: #{_forward.1} parent=11 // pred_check_branch
          %213 = sbr.rel (%p211) target = $region28
        $region27: #{_forward.1} parent=11 // pred_region
          %p214 = scmp.lt.s32.totalorder %s25, 0
          %s215 = scalar_select %p214, %s25, 0
          %s216 = scalar_lea.vmem %s4, %s215
        $region28: #{_forward.1} parent=11 // pred_fallthru
          _
      $region12: #{_forward.1} parent=5 // pred_fallthru
        _
      %p217 = scmp.lt.s32.totalorder %s15, 2
      // Predicated region
      $region29: #{_forward.1} parent=5 // pred_check
        %p218 = pneg %p217
      $region30: #{_forward.1} parent=5 // pred_check_branch
        %220 = sbr.rel (%p218) target = $region32
      $region31: #{_forward.1} parent=5 // pred_region
        // Predicated region
        $region33: #{_forward.1} parent=31 // pred_check
          %p221 = pneg %p47
        $region34: #{_forward.1} parent=31 // pred_check_branch
          %223 = sbr.rel (%p221) target = $region36
        $region35: #{_forward.1} parent=31 // pred_region
          %s224 = sand.u32 %s37, 1
          %s225 = scalar_lea.sflag [#allocation3], %s224
          %s226 = sand.u32 %s37, 1
          %s227 = smul.addr %s226, 8
          %s228 = scalar_lea.vmem [#allocation2], %s227
          %s230 = ssub.s32 128, 128
          %231 = vsyncadd %s225, %s230
          %s232 = smul.addr %s22, 128
          %s233 = scalar_lea.hbm %s0, %s232
          %s235 = sshll.u32 %s228, 4
          %s236 = int_to_ptr.vmem [resolvable:$true] %s235
          %238 = dma.hbm_to_vmem [thread:$0]  %s233, 128, %s236, %s225
        $region36: #{_forward.1} parent=31 // pred_fallthru
          _
      $region32: #{_forward.1} parent=5 // pred_fallthru
        _
      %p239 = scmp.le.s32.totalorder 1, %s15
      %p240 = scmp.lt.s32.totalorder %s15, 3
      %p241 = pnand %p239, %p240
      %p242 = pneg %p241
      // Predicated region
      $region37: #{_forward.1} parent=5 // pred_check
        _
      $region38: #{_forward.1} parent=5 // pred_check_branch
        %244 = sbr.rel (%p241) target = $region40
      $region39: #{_forward.1} parent=5 // pred_region
        %s245 = ssub.s32 %s15, 1
        %s246 = sand.u32 %s40, 1
        %s247 = scalar_lea.sflag [#allocation3], %s246
        %s248 = sand.u32 %s40, 1
        %s249 = smul.addr %s248, 8
        %s250 = scalar_lea.vmem [#allocation2], %s249
        // Predicated region
        $region41: #{_forward.1} parent=39 // pred_check
          %p251 = pneg %p53
        $region42: #{_forward.1} parent=39 // pred_check_branch
          %253 = sbr.rel (%p251) target = $region44
        $region43: #{_forward.1} parent=39 // pred_region
          %254 = dma.done %s247, 128
        $region44: #{_forward.1} parent=39 // pred_fallthru
          _
        // Predicated region
        $region45: #{_forward.1} parent=39 // pred_check
          %p255 = pneg %p121
        $region46: #{_forward.1} parent=39 // pred_check_branch
          %257 = sbr.rel (%p255) target = $region48
        $region47: #{_forward.1} parent=39 // pred_region
          %258 = dma.done [#allocation5], 256
        $region48: #{_forward.1} parent=39 // pred_fallthru
          _
        %s259 = sand.u32 %s40, 1
        %s260 = scalar_lea.sflag [#allocation3], %s259
        %s261 = sand.u32 %s40, 1
        %s262 = smul.addr %s261, 8
        %s263 = scalar_lea.vmem [#allocation2], %s262
        %p264 = pneg %p53
        %p265 = pneg %p50
        %p266 = pneg %p74
        %p267 = pneg %p71
        %p268 = pneg %p95
        %p269 = pneg %p92
        %p270 = pneg %p121
        %p271 = pneg %p118
        %p272 = scmp.lt.s32.totalorder %s25, 0
        %s273 = scalar_select %p272, %s25, 0
        %s274 = scalar_lea.vmem %s4, %s273
        %p275 = pneg %p147
        %p276 = pneg %p144
        %p277 = pneg %p175
        %p278 = pneg %p172
        %p279 = scmp.lt.s32.totalorder %s24, 1
        %s280 = scalar_select %p279, %s24, 1
        %p281 = scmp.lt.s32.totalorder %s25, 0
        %s282 = scalar_select %p281, %s25, 0
        %s283 = sadd.s32 %s282, %s280
        %s284 = smul.addr %s283, 8
        %s285 = scalar_lea.vmem %s5, %s284
        %p286 = scmp.lt.s32.totalorder %s25, 0
        %s287 = scalar_select %p286, %s25, 0
        %s288 = scalar_lea.vmem %s4, %s287
        %p289 = scmp.lt.s32.totalorder %s24, 1
        %s290 = scalar_select %p289, %s24, 1
        %p291 = scmp.lt.s32.totalorder %s25, 0
        %s292 = scalar_select %p291, %s25, 0
        %s293 = sadd.s32 %s292, %s290
        %s294 = smul.addr %s293, 8
        %s295 = scalar_lea.vmem %s5, %s294
        %v297 = vld [vmem:[%s250] sm:$0xff]
        %vm298 = vcmask 261120
        %v299 = vsel %vm298, %v297, 0.0
        %300 = vadd.xlane.f32.xlu0 %v299
        %v301 = vpop.xlane.xlu0 %300
        %v302 = vrcp.pop 32.0
        %v303 = vmul.f32 %v301, %v302
        %v304 = vsub.f32 %v297, %v303
        %v305 = vmul.f32 %v304, %v304
        %v306 = vsel %vm298, %v305, 0.0
        %307 = vadd.xlane.f32.xlu0 %v306
        %v308 = vpop.xlane.xlu0 %307
        %v309 = vmul.f32 %v308, %v302
        %v310 = vadd.f32 %v309, 1e-05
        %v311 = vrsqrt.pop %v310
        %v312 = vmul.f32 %v304, %v311
        %v313 = vld [vmem:[%s1] sm:$0x1]
        %v315 = vlaneseq
        %v316 = vshrl.u32 %v315, 7
        %v317 = vsub.s32 0, %v316
        %v318 = vrot.slane %v313, %v317
        %v320 = vmul.f32 %v312, %v318
        %v321 = vld [vmem:[%s2] sm:$0x1]
        %v323 = vlaneseq
        %v324 = vshrl.u32 %v323, 7
        %v325 = vsub.s32 0, %v324
        %v326 = vrot.slane %v321, %v325
        %v328 = vadd.f32 %v320, %v326
        %v329 = vpack.c.bf16 %v328, %v328
        %v330 = vld [vmem:[#allocation4] sm:$0xf]
        %v331 = vld [vmem:[#allocation4 + $0x4] sm:$0xf]
        %v332 = vld [vmem:[#allocation4 + $0x8] sm:$0xf]
        %v333 = vld [vmem:[#allocation4 + $0xc] sm:$0xf]
        %v334 = vld [vmem:[%s288] sm:$0x1]
        %v336 = vlaneseq
        %v337 = vshrl.u32 %v336, 7
        %v338 = vsub.s32 0, %v337
        %v339 = vrot.slane %v334, %v338
        %v345 = vunpack.c.l.b16 %v330
        %v346 = vunpack.c.l.b16 %v331
        %v347 = vunpack.c.l.b16 %v332
        %v348 = vunpack.c.l.b16 %v333
        %v349 = vpack.c.b16 %v346, %v345
        %v350 = vpack.c.b16 %v348, %v347
        %v354 = vsel %vm298, %v329, 0
        %356 = vmatprep.subr.bf16.mxu0 0
        %357 = vmatpush1.bf16.msra.mxu0 0
        %358 = vmatprep.subr.bf16.mxu0 0
        %359 = vmatpush1.bf16.msra.mxu0 0
        %360 = vmatprep.subr.bf16.mxu0 0
        %361 = vmatpush1.bf16.msra.mxu0 0
        %362 = vmatprep.subr.bf16.mxu0 0
        %363 = vmatpush1.bf16.msra.mxu0 0
        %364 = vmatprep.subr.bf16.mxu0 0
        %365 = vmatpush1.bf16.msra.mxu0 0
        %366 = vmatprep.subr.bf16.mxu0 0
        %367 = vmatpush1.bf16.msra.mxu0 0
        %368 = vmatprep.subr.bf16.mxu0 0
        %369 = vmatpush1.bf16.msra.mxu0 %v350
        %370 = vmatprep.subr.bf16.mxu0 0
        %371 = vmatpush1.bf16.msra.mxu0 %v349
        %372 = vmatprep.subr.bf16.mxu0 0
        %373 = vmatpush2.bf16.msra.mxu0 0
        %374 = vmatprep.subr.bf16.mxu0 0
        %375 = vmatpush2.bf16.msra.mxu0 0
        %376 = vmatprep.subr.bf16.mxu0 0
        %377 = vmatpush2.bf16.msra.mxu0 0
        %378 = vmatprep.subr.bf16.mxu0 0
        %379 = vmatpush2.bf16.msra.mxu0 0
        %380 = vmatprep.subr.bf16.mxu0 0
        %381 = vmatpush2.bf16.msra.mxu0 0
        %382 = vmatprep.subr.bf16.mxu0 0
        %383 = vmatpush2.bf16.msra.mxu0 0
        %384 = vmatprep.subr.bf16.mxu0 0
        %385 = vmatpush2.bf16.msra.mxu0 0
        %386 = vmatprep.subr.bf16.mxu0 0
        %387 = vmatpush2.bf16.msra.mxu0 0
        %388 = vmatprep.mubr.bf16.mxu0 0
        %389 = vmatmul.mubr.bf16.gmra.mxu0 %v354
        %v390 = vpop.f32.mrf.mxu0
        %v391 = vadd.f32 %v339, %v390
        %v392 = vpop.f32.mrf.mxu0
        %v393 = vpop.f32.mrf.mxu0
        %v394 = vpop.f32.mrf.mxu0
        %395 = vdwg.mxu0
        %v396 = vmax.f32 %v391, 0.0
        %397 = vst [vmem:[%s295] sm:$0xff] %v396
        %p398 = scmp.lt.s32.totalorder %s24, 1
        %s399 = scalar_select %p398, %s24, 1
        %p400 = scmp.lt.s32.totalorder %s25, 0
        %s401 = scalar_select %p400, %s25, 0
        %s402 = sadd.s32 %s401, %s399
        %s403 = smul.addr %s402, 8
        %s404 = scalar_lea.vmem %s5, %s403
        // Predicated region
        $region49: #{_forward.1} parent=39 // pred_check
          %p405 = pneg %p172
        $region50: #{_forward.1} parent=39 // pred_check_branch
          %407 = sbr.rel (%p405) target = $region52
        $region51: #{_forward.1} parent=39 // pred_region
          _
        $region52: #{_forward.1} parent=39 // pred_fallthru
          _
      $region40: #{_forward.1} parent=5 // pred_fallthru
        _
      %p408 = scmp.le.s32.totalorder 2, %s15
      // Predicated region
      $region53: #{_forward.1} parent=5 // pred_check
        %p409 = pneg %p408
      $region54: #{_forward.1} parent=5 // pred_check_branch
        %411 = sbr.rel (%p409) target = $region56
      $region55: #{_forward.1} parent=5 // pred_region
        %s412 = ssub.s32 %s15, 2
        // Predicated region
        $region57: #{_forward.1} parent=55 // pred_check
          %p413 = pneg %p178
        $region58: #{_forward.1} parent=55 // pred_check_branch
          %415 = sbr.rel (%p413) target = $region60
        $region59: #{_forward.1} parent=55 // pred_region
          %p416 = scmp.lt.s32.totalorder %s26, 1
          %s417 = scalar_select %p416, %s26, 1
          %p418 = scmp.lt.s32.totalorder %s27, 0
          %s419 = scalar_select %p418, %s27, 0
          %s420 = sadd.s32 %s419, %s417
          %s421 = smul.addr %s420, 8
          %s422 = scalar_lea.vmem %s5, %s421
        $region60: #{_forward.1} parent=55 // pred_fallthru
          _
      $region56: #{_forward.1} parent=5 // pred_fallthru
        _
    $region6: #{_forward.1} parent=1 // loop_footer
      %s19 = sadd.s32 1, %s15
    $region7: #{_forward.1} parent=1 // loop_footer_branch
      %14 = sbr.rel target = $region3
    $region8: #{_forward.1} parent=1 // loop_exit
      _
    %423 = vsyncpa [#allocation3], 1
    %s424 = scalar_lea.sflag [#allocation3], 1
    %425 = vsyncpa %s424, 1
    %426 = vsyncpa [#allocation5], 1

</llo_original>
